<compile_context>
chip_gen: v7x
topology: tpu7x:2x2x1
jax: 0.10.0
libtpu: 0.0.40
codegen_flags: <defaults>
</compile_context>

<pallas_src>
import functools

import jax
import jax.numpy as jnp
import numpy as np
from jax.experimental import pallas as pl
from jax.experimental.pallas import tpu as pltpu


def _round_up(x: int, m: int) -> int:
    return ((x + m - 1) // m) * m


# ---------------------------------------------------------------------------
# Kernels.  Each grid step sees a (BLOCK_ROWS, k) tile of timestamps (k
# consecutive timestamps packed per row so the output block is lane-dense)
# and emits a (BLOCK_ROWS, k * time_dim) tile.  k is a small static int.
# ---------------------------------------------------------------------------

def _sin_kernel(t_ref, w_ref, b_ref, o_ref, *, k: int):
    # out[r, j*D + d] = sin(w[d] * t[r, j] + b[d])
    t = t_ref[...]                                  # (R, k)
    w = w_ref[...]                                  # (1, D)
    b = b_ref[...]                                  # (1, D)
    pieces = [jnp.sin(t[:, j:j + 1] * w + b) for j in range(k)]
    out = pieces[0] if k == 1 else jnp.concatenate(pieces, axis=1)
    o_ref[...] = out.astype(o_ref.dtype)


def _fourier_kernel(t_ref, f_ref, o_ref, *, k: int):
    # out[r, j*D : j*D+D] = [cos(t[r, j] * freq), sin(t[r, j] * freq)]
    # (no separate concat-of-the-whole-output: each transcendental is computed
    #  exactly once and the full 128-lane row is stored densely in one go)
    t = t_ref[...]                                  # (R, k)
    f = f_ref[...]                                  # (1, D // 2)
    pieces = []
    for j in range(k):
        arg = t[:, j:j + 1] * f                     # same f32 product as ref
        pieces.append(jnp.cos(arg))
        pieces.append(jnp.sin(arg))
    o_ref[...] = jnp.concatenate(pieces, axis=1).astype(o_ref.dtype)


def _learnable_kernel(t_ref, w1_ref, b1_ref, w2_ref, b2_ref, o_ref, *, k: int):
    # Linear(1, D) -> ReLU -> Linear(D, D), applied to each packed timestamp.
    t = t_ref[...]                                  # (R, k)
    w1 = w1_ref[...]                                # (1, D)
    b1 = b1_ref[...]                                # (1, D)
    w2 = w2_ref[...]                                # (D, D)  pre-transposed: h @ w2
    b2 = b2_ref[...]                                # (1, D)
    pieces = []
    for j in range(k):
        h = jnp.maximum(t[:, j:j + 1] * w1 + b1, 0.0)           # (R, D)
        pieces.append(jnp.dot(h, w2, preferred_element_type=jnp.float32) + b2)
    out = pieces[0] if k == 1 else jnp.concatenate(pieces, axis=1)
    o_ref[...] = out.astype(o_ref.dtype)


# ---------------------------------------------------------------------------
# Wrapper module
# ---------------------------------------------------------------------------

class TimeEncoder:
    """JAX/Pallas re-implementation of the PyTorch TimeEncoder."""

    # Packed rows per grid step.  With time_dim=32 (k=4) this is 8192
    # timestamps / step and a 1 MiB f32 output block -> ~2 MiB double
    # buffered: comfortably inside v5e's 16 MiB default scoped VMEM and
    # v7x's 64 MiB physical VMEM.
    DEFAULT_BLOCK_ROWS = 2048
    MAX_BLOCK_BYTES = 4 * 1024 * 1024   # cap per (single-buffered) output block

    def __init__(self, time_dim: int, method: str = "sin",
                 out_dtype=jnp.float32):
        self.time_dim = time_dim
        self.method = method
        # f32 by default for exact parity with the PyTorch module; downstream
        # consumers that accept bf16 can pass out_dtype=jnp.bfloat16 (math
        # stays in f32, only the final store is cast).
        self.out_dtype = out_dtype
        key = jax.random.PRNGKey(42)

        if method == "sin":
            # PyTorch init: w = ones(time_dim), b = zeros(time_dim)
            self.w = jnp.ones((1, time_dim), dtype=jnp.float32)
            self.b = jnp.zeros((1, time_dim), dtype=jnp.float32)
        elif method == "fourier":
            assert time_dim % 2 == 0
            # torch.logspace(start=0, end=9, steps=time_dim // 2)
            freq = np.logspace(0.0, 9.0, num=time_dim // 2).astype(np.float32)
            self.freq_list = jnp.asarray(freq).reshape(1, time_dim // 2)
        elif method == "learnable":
            k1, k2, k3, k4 = jax.random.split(key, 4)
            # NOTE: w2 is stored pre-transposed so the kernel computes h @ w2.
            # Real PyTorch nn.Linear weights must be transposed when loaded.
            self.w1 = 0.1 * jax.random.normal(k1, (1, time_dim), jnp.float32)
            self.b1 = 0.1 * jax.random.normal(k2, (1, time_dim), jnp.float32)
            self.w2 = 0.1 * jax.random.normal(k3, (time_dim, time_dim), jnp.float32)
            self.b2 = 0.1 * jax.random.normal(k4, (1, time_dim), jnp.float32)
        else:
            raise ValueError(f"Unknown time encoding method: {method}")

    # -- layout helpers -----------------------------------------------------

    def _packing(self, n: int):
        d = self.time_dim
        k = max(1, 128 // d)            # timestamps fused per output row
        lanes = k * d                   # lane-dense when d <= 128
        rows_needed = _round_up(pl.cdiv(n, k), 8)
        cap = max(8, (self.MAX_BLOCK_BYTES // (lanes * 4)) // 8 * 8)
        block_rows = min(self.DEFAULT_BLOCK_ROWS, cap, rows_needed)
        rows = _round_up(rows_needed, block_rows)
        return k, lanes, rows, block_rows

    def __call__(self, timestamps: jax.Array) -> jax.Array:
        n = int(timestamps.shape[0])
        d = self.time_dim
        k, lanes, rows, block_rows = self._packing(n)
        n_pad = rows * k

        t = timestamps.reshape(n).astype(jnp.float32)
        if n_pad != n:
            t = jnp.pad(t, (0, n_pad - n))
        t2d = t.reshape(rows, k)

        grid = (rows // block_rows,)
        t_spec = pl.BlockSpec((block_rows, k), lambda i: (i, 0))
        out_spec = pl.BlockSpec((block_rows, lanes), lambda i: (i, 0))
        out_shape = jax.ShapeDtypeStruct((rows, lanes), self.out_dtype)

        def const_spec(shape):
            # constant block index -> parameter stays VMEM-resident.
            return pl.BlockSpec(shape, lambda i: (0, 0))

        cparams = pltpu.CompilerParams(dimension_semantics=("parallel",))

        if self.method == "sin":
            cost = pl.CostEstimate(
                flops=2 * n_pad * d,
                transcendentals=n_pad * d,
                bytes_accessed=4 * (n_pad + n_pad * d + 2 * d))
            packed = pl.pallas_call(
                functools.partial(_sin_kernel, k=k),
                out_shape=out_shape,
                grid=grid,
                in_specs=[t_spec, const_spec((1, d)), const_spec((1, d))],
                out_specs=out_spec,
                compiler_params=cparams,
                cost_estimate=cost,
            )(t2d, self.w, self.b)
        elif self.method == "fourier":
            cost = pl.CostEstimate(
                flops=n_pad * d,
                transcendentals=n_pad * d,
                bytes_accessed=4 * (n_pad + n_pad * d + d // 2))
            packed = pl.pallas_call(
                functools.partial(_fourier_kernel, k=k),
                out_shape=out_shape,
                grid=grid,
                in_specs=[t_spec, const_spec((1, d // 2))],
                out_specs=out_spec,
                compiler_params=cparams,
                cost_estimate=cost,
            )(t2d, self.freq_list)
        else:  # learnable
            cost = pl.CostEstimate(
                flops=2 * n_pad * d + 2 * n_pad * d * d,
                transcendentals=0,
                bytes_accessed=4 * (n_pad + n_pad * d + d * d + 3 * d))
            packed = pl.pallas_call(
                functools.partial(_learnable_kernel, k=k),
                out_shape=out_shape,
                grid=grid,
                in_specs=[t_spec, const_spec((1, d)), const_spec((1, d)),
                          const_spec((d, d)), const_spec((1, d))],
                out_specs=out_spec,
                compiler_params=cparams,
                cost_estimate=cost,
            )(t2d, self.w1, self.b1, self.w2, self.b2)

        # Unpack (rows, k*d) -> (rows*k, d) and drop padding rows (pure layout
        # plumbing done by XLA outside the kernel).
        return packed.reshape(rows * k, d)[:n]


# ---------------------------------------------------------------------------
# Pure-JAX references (for correctness check)
# ---------------------------------------------------------------------------

def _ref_sin(enc, t):
    return jnp.sin(enc.w * t[:, None] + enc.b)


def _ref_fourier(enc, t):
    arg = t[:, None] * enc.freq_list
    return jnp.concatenate([jnp.cos(arg), jnp.sin(arg)], axis=1)


def _ref_learnable(enc, t):
    h = jnp.maximum(t[:, None] * enc.w1 + enc.b1, 0.0)
    return h @ enc.w2 + enc.b2


if __name__ == "__main__":
    N = 16
    TIME_DIM = 32

    key = jax.random.PRNGKey(0)
    timestamps = jax.random.uniform(key, (N,), jnp.float32, minval=0.0, maxval=10.0)

    refs = {"sin": _ref_sin, "fourier": _ref_fourier, "learnable": _ref_learnable}

    for method in ("sin", "fourier", "learnable"):
        enc = TimeEncoder(TIME_DIM, method=method)
        out = jax.block_until_ready(enc(timestamps))
        ref = refs[method](enc, timestamps)
        np.testing.assert_allclose(np.asarray(out), np.asarray(ref),
                                   rtol=1e-5, atol=1e-5)
        assert out.shape == (N, TIME_DIM)

    print("KERNEL_OK")
</pallas_src>

<mosaic_0001>
module attributes {stable_mosaic.version = 11 : i64} {
  func.func @_sin_kernel(%arg0: i32, %arg1: memref<8x4xf32, #tpu.memory_space<vmem>>, %arg2: memref<1x32xf32, #tpu.memory_space<vmem>>, %arg3: memref<1x32xf32, #tpu.memory_space<vmem>>, %arg4: memref<8x128xf32, #tpu.memory_space<vmem>>) attributes {dimension_semantics = [#tpu.dimension_semantics<parallel>], iteration_bounds = array<i64: 1>, scalar_prefetch = 0 : i64, scratch_operands = 0 : i64, tpu.core_type = #tpu.core_type<tc>, window_params = [{transform_indices = @transform_0, window_bounds = array<i64: 8, 4>}, {pipeline_mode = #tpu.pipeline_mode<synchronous>, transform_indices = @transform_1, window_bounds = array<i64: 1, 32>}, {pipeline_mode = #tpu.pipeline_mode<synchronous>, transform_indices = @transform_2, window_bounds = array<i64: 1, 32>}, {transform_indices = @transform_3, window_bounds = array<i64: 8, 128>}]} {
    %c0 = arith.constant 0 : index
    %c0_0 = arith.constant 0 : index
    %0 = vector.load %arg1[%c0, %c0_0] : memref<8x4xf32, #tpu.memory_space<vmem>>, vector<8x4xf32>
    %c0_1 = arith.constant 0 : index
    %c0_2 = arith.constant 0 : index
    %1 = vector.load %arg2[%c0_1, %c0_2] : memref<1x32xf32, #tpu.memory_space<vmem>>, vector<1x32xf32>
    %c0_3 = arith.constant 0 : index
    %c0_4 = arith.constant 0 : index
    %2 = vector.load %arg3[%c0_3, %c0_4] : memref<1x32xf32, #tpu.memory_space<vmem>>, vector<1x32xf32>
    %3 = vector.extract_strided_slice %0 {offsets = [0, 0], sizes = [8, 1], strides = [1, 1]} : vector<8x4xf32> to vector<8x1xf32>
    %4 = vector.broadcast %3 : vector<8x1xf32> to vector<8x32xf32>
    %5 = vector.broadcast %1 : vector<1x32xf32> to vector<8x32xf32>
    %6 = arith.mulf %4, %5 : vector<8x32xf32>
    %7 = vector.broadcast %2 : vector<1x32xf32> to vector<8x32xf32>
    %8 = arith.addf %6, %7 : vector<8x32xf32>
    %9 = math.sin %8 : vector<8x32xf32>
    %10 = vector.extract_strided_slice %0 {offsets = [0, 1], sizes = [8, 1], strides = [1, 1]} : vector<8x4xf32> to vector<8x1xf32>
    %11 = vector.broadcast %10 : vector<8x1xf32> to vector<8x32xf32>
    %12 = vector.broadcast %1 : vector<1x32xf32> to vector<8x32xf32>
    %13 = arith.mulf %11, %12 : vector<8x32xf32>
    %14 = vector.broadcast %2 : vector<1x32xf32> to vector<8x32xf32>
    %15 = arith.addf %13, %14 : vector<8x32xf32>
    %16 = math.sin %15 : vector<8x32xf32>
    %17 = vector.extract_strided_slice %0 {offsets = [0, 2], sizes = [8, 1], strides = [1, 1]} : vector<8x4xf32> to vector<8x1xf32>
    %18 = vector.broadcast %17 : vector<8x1xf32> to vector<8x32xf32>
    %19 = vector.broadcast %1 : vector<1x32xf32> to vector<8x32xf32>
    %20 = arith.mulf %18, %19 : vector<8x32xf32>
    %21 = vector.broadcast %2 : vector<1x32xf32> to vector<8x32xf32>
    %22 = arith.addf %20, %21 : vector<8x32xf32>
    %23 = math.sin %22 : vector<8x32xf32>
    %24 = vector.extract_strided_slice %0 {offsets = [0, 3], sizes = [8, 1], strides = [1, 1]} : vector<8x4xf32> to vector<8x1xf32>
    %25 = vector.broadcast %24 : vector<8x1xf32> to vector<8x32xf32>
    %26 = vector.broadcast %1 : vector<1x32xf32> to vector<8x32xf32>
    %27 = arith.mulf %25, %26 : vector<8x32xf32>
    %28 = vector.broadcast %2 : vector<1x32xf32> to vector<8x32xf32>
    %29 = arith.addf %27, %28 : vector<8x32xf32>
    %30 = math.sin %29 : vector<8x32xf32>
    %31 = tpu.concatenate %9, %16, %23, %30 in 1 : vector<8x32xf32>, vector<8x32xf32>, vector<8x32xf32>, vector<8x32xf32> -> vector<8x128xf32>
    %c0_5 = arith.constant 0 : index
    %c0_6 = arith.constant 0 : index
    %32 = vector.load %arg4[%c0_5, %c0_6] : memref<8x128xf32, #tpu.memory_space<vmem>>, vector<8x128xf32>
    tpu.vector_store %arg4[%c0_5, %c0_6], %31 {strides = array<i32>} : memref<8x128xf32, #tpu.memory_space<vmem>>, vector<8x128xf32>,
    return
  }
  func.func @transform_0(%arg0: i32) -> (i32, i32) {
    %c0_i32 = arith.constant 0 : i32
    %c0_i32_0 = arith.constant 0 : i32
    return %arg0, %c0_i32 : i32, i32
  }
  func.func @transform_1(%arg0: i32) -> (i32, i32) {
    %c0_i32 = arith.constant 0 : i32
    %c0_i32_0 = arith.constant 0 : i32
    %c0_i32_1 = arith.constant 0 : i32
    return %c0_i32, %c0_i32_0 : i32, i32
  }
  func.func @transform_2(%arg0: i32) -> (i32, i32) {
    %c0_i32 = arith.constant 0 : i32
    %c0_i32_0 = arith.constant 0 : i32
    %c0_i32_1 = arith.constant 0 : i32
    return %c0_i32, %c0_i32_0 : i32, i32
  }
  func.func @transform_3(%arg0: i32) -> (i32, i32) {
    %c0_i32 = arith.constant 0 : i32
    %c0_i32_0 = arith.constant 0 : i32
    return %arg0, %c0_i32 : i32, i32
  }
}

</mosaic_0001>

<llo_original>
// kernel: tpu_custom_call.1
$region0: #{tpu_custom_call.1}
  #allocation0 [shape = 'u32[]', space=smem, size = 0x4, offset = 0x4, fixed_abs, tag = 'smem constant byte address 0x4 - core index']
  #allocation1 [shape = 'u32[144,128]{1,0:T(1,128)}', space=vmem, size = 0x12000, scoped, tag = 'internal scratch']
  %s0 = inlined_call_operand.vmem [shape: f32[8,4], index: 0, kind: input, shape index: {}]
  %s1 = inlined_call_operand.vmem [shape: f32[1,32], index: 1, kind: input, shape index: {}]
  %s2 = inlined_call_operand.vmem [shape: f32[1,32], index: 2, kind: input, shape index: {}]
  %s3 = inlined_call_operand.hbm [shape: f32[8,128], index: 3, kind: output, shape index: {}]
  %s4 = sld [smem:[#allocation0]]
  $region22: #{tpu_custom_call.1} parent=0
    _
  %s6 = ssub.s32 1, %s4
  %s7 = scalar_select 0, %s6, %s4
  $region1: #{tpu_custom_call.1} parent=0
    #allocation2 [shape = 'u8[4096]{0}', space=vmem, size = 0x1000, scoped, tag = 'output window, operand 0, single buffered']
    #allocation3 [shape = 's32[1]{0}', space=sflag, size = 0x4, scoped, tag = 'scoped memory for tpu_custom_call.1']
    %8 = vsyncpa [#allocation3], 0
    // Predicated region
    $region2: #{tpu_custom_call.1} parent=1 // pred_check
      _
    $region3: #{tpu_custom_call.1} parent=1 // pred_check_branch
      %10 = sbr.rel (0) target = $region5
    $region4: #{tpu_custom_call.1} parent=1 // pred_region
      _
    $region5: #{tpu_custom_call.1} parent=1 // pred_fallthru
      _
    // Predicated region
    $region6: #{tpu_custom_call.1} parent=1 // pred_check
      _
    $region7: #{tpu_custom_call.1} parent=1 // pred_check_branch
      %12 = sbr.rel (0) target = $region9
    $region8: #{tpu_custom_call.1} parent=1 // pred_region
      _
    $region9: #{tpu_custom_call.1} parent=1 // pred_fallthru
      _
    // Predicated region
    $region10: #{tpu_custom_call.1} parent=1 // pred_check
      _
    $region11: #{tpu_custom_call.1} parent=1 // pred_check_branch
      %14 = sbr.rel (0) target = $region13
    $region12: #{tpu_custom_call.1} parent=1 // pred_region
      _
    $region13: #{tpu_custom_call.1} parent=1 // pred_fallthru
      _
    %v15 = vld [vmem:[%s0] sm:$0xff]
    %v16 = vld [vmem:[%s1] sm:$0x1]
    %v17 = vld [vmem:[%s2] sm:$0x1]
    %19 = vset.pattern.permute.xlu0 0
    %20 = vperm.xlu0 %19, %v15
    %v21 = vpop.permute.xlu0 %20
    %v24 = vlaneseq
    %v25 = vshrl.u32 %v24, 7
    %v26 = vsub.s32 0, %v25
    %v27 = vrot.slane %v16, %v26
    %v29 = vmul.f32 %v21, %v27
    %v31 = vlaneseq
    %v32 = vshrl.u32 %v31, 7
    %v33 = vsub.s32 0, %v32
    %v34 = vrot.slane %v17, %v33
    %v36 = vadd.f32 %v29, %v34
    %v37 = vand.u32 2147483647, %v36
    %vm38 = vcmp.le.f32.partialorder %v37, 0.7853982
    %vm39 = vcmp.lt.s32.totalorder %v36, 0
    %v40 = vand.u32 %v36, 2139095040
    %v41 = vshrl.u32 %v40, 23
    %v42 = vsub.s32 %v41, 127
    %v43 = vand.u32 2147483647, %v36
    %v44 = vand.u32 %v43, 8388607
    %v45 = vor.u32 %v44, 8388608
    %v46 = vsub.s32 0, %v45
    %v47 = vadd.s32 %v42, 1
    %vm48 = vcmp.gt.s32.totalorder %v47, 0
    %v49 = vsel %vm48, %v47, 0
    %v50 = vshrl.u32 %v49, 5
    %v51 = vand.u32 %v49, 31
    %v52 = vsub.s32 32, %v51
    %v53 = vshrl.u32 683565275, %v52
    %v54 = vshll.u32 683565275, %v51
    %v55 = vshrl.u32 2475754826, %v52
    %v56 = vor.u32 %v54, %v55
    %v57 = vshll.u32 2475754826, %v51
    %v58 = vshrl.u32 2131351028, %v52
    %v59 = vor.u32 %v57, %v58
    %v60 = vshll.u32 2131351028, %v51
    %v61 = vshrl.u32 2102212464, %v52
    %v62 = vor.u32 %v60, %v61
    %v63 = vshll.u32 2102212464, %v51
    %v64 = vshrl.u32 920167782, %v52
    %v65 = vor.u32 %v63, %v64
    %v66 = vshll.u32 920167782, %v51
    %v67 = vshrl.u32 1326507024, %v52
    %v68 = vor.u32 %v66, %v67
    %vm69 = vcmp.lt.s32.totalorder %v50, 1
    %vm70 = vcmp.lt.s32.totalorder %v50, 2
    %vm71 = vcmp.lt.s32.totalorder %v50, 3
    %vm72 = vcmp.lt.s32.totalorder %v50, 4
    %v73 = vsel %vm69, %v53, %v56
    %v74 = vsel %vm72, %v62, 2102212464
    %v75 = vsel %vm71, %v59, %v74
    %v76 = vsel %vm70, %v73, %v75
    %v77 = vsel %vm69, %v56, %v59
    %v78 = vsel %vm72, %v65, 920167782
    %v79 = vsel %vm71, %v62, %v78
    %v80 = vsel %vm70, %v77, %v79
    %v81 = vsel %vm69, %v59, %v62
    %v82 = vsel %vm72, %v68, 1326507024
    %v83 = vsel %vm71, %v65, %v82
    %v84 = vsel %vm70, %v81, %v83
    %v85 = vshll.u32 %v45, 8
    %v86 = vmul.u32.u64.compose %v85, %v84
    %v87 = vextract.low.u32 %v86
    %v88 = vextract.high.u32 %v86
    %v89 = vmul.u32.u64.compose %v85, %v80
    %v90 = vextract.low.u32 %v89
    %v91 = vextract.high.u32 %v89
    %v92 = vmul.u32 %v85, %v76
    %v93 = vadd.s32 %v88, %v90
    %vm94 = vc.u32 %v88, %v90
    %v95 = vadd.s32 %v91, 1
    %v96 = vsel %vm94, %v95, %v91
    %v97 = vadd.s32 %v92, %v96
    %v98 = vadd.s32 %v97, 536870912
    %v99 = vshrl.u32 %v98, 30
    %v100 = vshll.u32 %v99, 30
    %v101 = vsub.s32 %v97, %v100
    %vm102 = vcmp.lt.s32.totalorder %v101, 0
    %v103 = vsub.s32 0, %v101
    %v104 = vsel %vm102, %v103, %v101
    %v105 = vclz %v104
    %v106 = vsub.s32 %v105, 2
    %vm107 = vcmp.gt.s32.totalorder 0, %v106
    %v108 = vsel %vm107, 0, %v106
    %v109 = vsub.s32 32, %v108
    %v110 = vshll.u32 %v101, %v108
    %v111 = vshrl.u32 %v93, %v109
    %v112 = vor.u32 %v110, %v111
    %v113 = vsub.s32 4294967266, %v108
    %v114 = vadd.s32 %v113, 127
    %v115 = vshll.u32 %v114, 23
    %v116 = vor.u32 4788187, %v115
    %v117 = vand.u32 2147483647, %v116
    %v119 = vcvt.s32.f32 %v112
    %v120 = vmul.f32 %v119, %v117
    %v121 = vxor.u32 %v120, 2147483648
    %v122 = vsel %vm39, %v121, %v120
    %v123 = vsub.s32 4, %v99
    %v124 = vsel %vm39, %v123, %v99
    %v125 = vsel %vm38, %v36, %v122
    %v126 = vsel %vm38, 0, %v124
    %v127 = vcosq.f32.pop %v125
    %v128 = vsinq.f32.pop %v125
    %vm129 = vweird.f32 %v36
    %v130 = vadd.s32 %v126, 3
    %v131 = vand.u32 %v130, 3
    %vm132 = vcmp.lt.s32.totalorder %v131, 2
    %vm133 = vcmp.eq.s32.totalorder %v131, 0
    %v134 = vxor.u32 %v128, 2147483648
    %v135 = vsel %vm133, %v127, %v134
    %vm136 = vcmp.eq.s32.totalorder %v131, 2
    %v137 = vxor.u32 %v127, 2147483648
    %v138 = vsel %vm136, %v137, %v128
    %v139 = vsel %vm132, %v135, %v138
    %v140 = vsel %vm129, nan, %v139
    %141 = vset.pattern.permute.xlu0 1
    %142 = vperm.xlu0 %141, %v15
    %v143 = vpop.permute.xlu0 %142
    %v145 = vmul.f32 %v143, %v27
    %v146 = vadd.f32 %v145, %v34
    %v147 = vand.u32 2147483647, %v146
    %vm148 = vcmp.le.f32.partialorder %v147, 0.7853982
    %vm149 = vcmp.lt.s32.totalorder %v146, 0
    %v150 = vand.u32 %v146, 2139095040
    %v151 = vshrl.u32 %v150, 23
    %v152 = vsub.s32 %v151, 127
    %v153 = vand.u32 2147483647, %v146
    %v154 = vand.u32 %v153, 8388607
    %v155 = vor.u32 %v154, 8388608
    %v156 = vsub.s32 0, %v155
    %v157 = vadd.s32 %v152, 1
    %vm158 = vcmp.gt.s32.totalorder %v157, 0
    %v159 = vsel %vm158, %v157, 0
    %v160 = vshrl.u32 %v159, 5
    %v161 = vand.u32 %v159, 31
    %v162 = vsub.s32 32, %v161
    %v163 = vshrl.u32 683565275, %v162
    %v164 = vshll.u32 683565275, %v161
    %v165 = vshrl.u32 2475754826, %v162
    %v166 = vor.u32 %v164, %v165
    %v167 = vshll.u32 2475754826, %v161
    %v168 = vshrl.u32 2131351028, %v162
    %v169 = vor.u32 %v167, %v168
    %v170 = vshll.u32 2131351028, %v161
    %v171 = vshrl.u32 2102212464, %v162
    %v172 = vor.u32 %v170, %v171
    %v173 = vshll.u32 2102212464, %v161
    %v174 = vshrl.u32 920167782, %v162
    %v175 = vor.u32 %v173, %v174
    %v176 = vshll.u32 920167782, %v161
    %v177 = vshrl.u32 1326507024, %v162
    %v178 = vor.u32 %v176, %v177
    %vm179 = vcmp.lt.s32.totalorder %v160, 1
    %vm180 = vcmp.lt.s32.totalorder %v160, 2
    %vm181 = vcmp.lt.s32.totalorder %v160, 3
    %vm182 = vcmp.lt.s32.totalorder %v160, 4
    %v183 = vsel %vm179, %v163, %v166
    %v184 = vsel %vm182, %v172, 2102212464
    %v185 = vsel %vm181, %v169, %v184
    %v186 = vsel %vm180, %v183, %v185
    %v187 = vsel %vm179, %v166, %v169
    %v188 = vsel %vm182, %v175, 920167782
    %v189 = vsel %vm181, %v172, %v188
    %v190 = vsel %vm180, %v187, %v189
    %v191 = vsel %vm179, %v169, %v172
    %v192 = vsel %vm182, %v178, 1326507024
    %v193 = vsel %vm181, %v175, %v192
    %v194 = vsel %vm180, %v191, %v193
    %v195 = vshll.u32 %v155, 8
    %v196 = vmul.u32.u64.compose %v195, %v194
    %v197 = vextract.low.u32 %v196
    %v198 = vextract.high.u32 %v196
    %v199 = vmul.u32.u64.compose %v195, %v190
    %v200 = vextract.low.u32 %v199
    %v201 = vextract.high.u32 %v199
    %v202 = vmul.u32 %v195, %v186
    %v203 = vadd.s32 %v198, %v200
    %vm204 = vc.u32 %v198, %v200
    %v205 = vadd.s32 %v201, 1
    %v206 = vsel %vm204, %v205, %v201
    %v207 = vadd.s32 %v202, %v206
    %v208 = vadd.s32 %v207, 536870912
    %v209 = vshrl.u32 %v208, 30
    %v210 = vshll.u32 %v209, 30
    %v211 = vsub.s32 %v207, %v210
    %vm212 = vcmp.lt.s32.totalorder %v211, 0
    %v213 = vsub.s32 0, %v211
    %v214 = vsel %vm212, %v213, %v211
    %v215 = vclz %v214
    %v216 = vsub.s32 %v215, 2
    %vm217 = vcmp.gt.s32.totalorder 0, %v216
    %v218 = vsel %vm217, 0, %v216
    %v219 = vsub.s32 32, %v218
    %v220 = vshll.u32 %v211, %v218
    %v221 = vshrl.u32 %v203, %v219
    %v222 = vor.u32 %v220, %v221
    %v223 = vsub.s32 4294967266, %v218
    %v224 = vadd.s32 %v223, 127
    %v225 = vshll.u32 %v224, 23
    %v226 = vor.u32 4788187, %v225
    %v227 = vand.u32 2147483647, %v226
    %v229 = vcvt.s32.f32 %v222
    %v230 = vmul.f32 %v229, %v227
    %v231 = vxor.u32 %v230, 2147483648
    %v232 = vsel %vm149, %v231, %v230
    %v233 = vsub.s32 4, %v209
    %v234 = vsel %vm149, %v233, %v209
    %v235 = vsel %vm148, %v146, %v232
    %v236 = vsel %vm148, 0, %v234
    %v237 = vcosq.f32.pop %v235
    %v238 = vsinq.f32.pop %v235
    %vm239 = vweird.f32 %v146
    %v240 = vadd.s32 %v236, 3
    %v241 = vand.u32 %v240, 3
    %vm242 = vcmp.lt.s32.totalorder %v241, 2
    %vm243 = vcmp.eq.s32.totalorder %v241, 0
    %v244 = vxor.u32 %v238, 2147483648
    %v245 = vsel %vm243, %v237, %v244
    %vm246 = vcmp.eq.s32.totalorder %v241, 2
    %v247 = vxor.u32 %v237, 2147483648
    %v248 = vsel %vm246, %v247, %v238
    %v249 = vsel %vm242, %v245, %v248
    %v250 = vsel %vm239, nan, %v249
    %251 = vset.pattern.permute.xlu0 2
    %252 = vperm.xlu0 %251, %v15
    %v253 = vpop.permute.xlu0 %252
    %v255 = vmul.f32 %v253, %v27
    %v256 = vadd.f32 %v255, %v34
    %v257 = vand.u32 2147483647, %v256
    %vm258 = vcmp.le.f32.partialorder %v257, 0.7853982
    %vm259 = vcmp.lt.s32.totalorder %v256, 0
    %v260 = vand.u32 %v256, 2139095040
    %v261 = vshrl.u32 %v260, 23
    %v262 = vsub.s32 %v261, 127
    %v263 = vand.u32 2147483647, %v256
    %v264 = vand.u32 %v263, 8388607
    %v265 = vor.u32 %v264, 8388608
    %v266 = vsub.s32 0, %v265
    %v267 = vadd.s32 %v262, 1
    %vm268 = vcmp.gt.s32.totalorder %v267, 0
    %v269 = vsel %vm268, %v267, 0
    %v270 = vshrl.u32 %v269, 5
    %v271 = vand.u32 %v269, 31
    %v272 = vsub.s32 32, %v271
    %v273 = vshrl.u32 683565275, %v272
    %v274 = vshll.u32 683565275, %v271
    %v275 = vshrl.u32 2475754826, %v272
    %v276 = vor.u32 %v274, %v275
    %v277 = vshll.u32 2475754826, %v271
    %v278 = vshrl.u32 2131351028, %v272
    %v279 = vor.u32 %v277, %v278
    %v280 = vshll.u32 2131351028, %v271
    %v281 = vshrl.u32 2102212464, %v272
    %v282 = vor.u32 %v280, %v281
    %v283 = vshll.u32 2102212464, %v271
    %v284 = vshrl.u32 920167782, %v272
    %v285 = vor.u32 %v283, %v284
    %v286 = vshll.u32 920167782, %v271
    %v287 = vshrl.u32 1326507024, %v272
    %v288 = vor.u32 %v286, %v287
    %vm289 = vcmp.lt.s32.totalorder %v270, 1
    %vm290 = vcmp.lt.s32.totalorder %v270, 2
    %vm291 = vcmp.lt.s32.totalorder %v270, 3
    %vm292 = vcmp.lt.s32.totalorder %v270, 4
    %v293 = vsel %vm289, %v273, %v276
    %v294 = vsel %vm292, %v282, 2102212464
    %v295 = vsel %vm291, %v279, %v294
    %v296 = vsel %vm290, %v293, %v295
    %v297 = vsel %vm289, %v276, %v279
    %v298 = vsel %vm292, %v285, 920167782
    %v299 = vsel %vm291, %v282, %v298
    %v300 = vsel %vm290, %v297, %v299
    %v301 = vsel %vm289, %v279, %v282
    %v302 = vsel %vm292, %v288, 1326507024
    %v303 = vsel %vm291, %v285, %v302
    %v304 = vsel %vm290, %v301, %v303
    %v305 = vshll.u32 %v265, 8
    %v306 = vmul.u32.u64.compose %v305, %v304
    %v307 = vextract.low.u32 %v306
    %v308 = vextract.high.u32 %v306
    %v309 = vmul.u32.u64.compose %v305, %v300
    %v310 = vextract.low.u32 %v309
    %v311 = vextract.high.u32 %v309
    %v312 = vmul.u32 %v305, %v296
    %v313 = vadd.s32 %v308, %v310
    %vm314 = vc.u32 %v308, %v310
    %v315 = vadd.s32 %v311, 1
    %v316 = vsel %vm314, %v315, %v311
    %v317 = vadd.s32 %v312, %v316
    %v318 = vadd.s32 %v317, 536870912
    %v319 = vshrl.u32 %v318, 30
    %v320 = vshll.u32 %v319, 30
    %v321 = vsub.s32 %v317, %v320
    %vm322 = vcmp.lt.s32.totalorder %v321, 0
    %v323 = vsub.s32 0, %v321
    %v324 = vsel %vm322, %v323, %v321
    %v325 = vclz %v324
    %v326 = vsub.s32 %v325, 2
    %vm327 = vcmp.gt.s32.totalorder 0, %v326
    %v328 = vsel %vm327, 0, %v326
    %v329 = vsub.s32 32, %v328
    %v330 = vshll.u32 %v321, %v328
    %v331 = vshrl.u32 %v313, %v329
    %v332 = vor.u32 %v330, %v331
    %v333 = vsub.s32 4294967266, %v328
    %v334 = vadd.s32 %v333, 127
    %v335 = vshll.u32 %v334, 23
    %v336 = vor.u32 4788187, %v335
    %v337 = vand.u32 2147483647, %v336
    %v339 = vcvt.s32.f32 %v332
    %v340 = vmul.f32 %v339, %v337
    %v341 = vxor.u32 %v340, 2147483648
    %v342 = vsel %vm259, %v341, %v340
    %v343 = vsub.s32 4, %v319
    %v344 = vsel %vm259, %v343, %v319
    %v345 = vsel %vm258, %v256, %v342
    %v346 = vsel %vm258, 0, %v344
    %v347 = vcosq.f32.pop %v345
    %v348 = vsinq.f32.pop %v345
    %vm349 = vweird.f32 %v256
    %v350 = vadd.s32 %v346, 3
    %v351 = vand.u32 %v350, 3
    %vm352 = vcmp.lt.s32.totalorder %v351, 2
    %vm353 = vcmp.eq.s32.totalorder %v351, 0
    %v354 = vxor.u32 %v348, 2147483648
    %v355 = vsel %vm353, %v347, %v354
    %vm356 = vcmp.eq.s32.totalorder %v351, 2
    %v357 = vxor.u32 %v347, 2147483648
    %v358 = vsel %vm356, %v357, %v348
    %v359 = vsel %vm352, %v355, %v358
    %v360 = vsel %vm349, nan, %v359
    %361 = vset.pattern.permute.xlu0 3
    %362 = vperm.xlu0 %361, %v15
    %v363 = vpop.permute.xlu0 %362
    %v365 = vmul.f32 %v363, %v27
    %v366 = vadd.f32 %v365, %v34
    %v367 = vand.u32 2147483647, %v366
    %vm368 = vcmp.le.f32.partialorder %v367, 0.7853982
    %vm369 = vcmp.lt.s32.totalorder %v366, 0
    %v370 = vand.u32 %v366, 2139095040
    %v371 = vshrl.u32 %v370, 23
    %v372 = vsub.s32 %v371, 127
    %v373 = vand.u32 2147483647, %v366
    %v374 = vand.u32 %v373, 8388607
    %v375 = vor.u32 %v374, 8388608
    %v376 = vsub.s32 0, %v375
    %v377 = vadd.s32 %v372, 1
    %vm378 = vcmp.gt.s32.totalorder %v377, 0
    %v379 = vsel %vm378, %v377, 0
    %v380 = vshrl.u32 %v379, 5
    %v381 = vand.u32 %v379, 31
    %v382 = vsub.s32 32, %v381
    %v383 = vshrl.u32 683565275, %v382
    %v384 = vshll.u32 683565275, %v381
    %v385 = vshrl.u32 2475754826, %v382
    %v386 = vor.u32 %v384, %v385
    %v387 = vshll.u32 2475754826, %v381
    %v388 = vshrl.u32 2131351028, %v382
    %v389 = vor.u32 %v387, %v388
    %v390 = vshll.u32 2131351028, %v381
    %v391 = vshrl.u32 2102212464, %v382
    %v392 = vor.u32 %v390, %v391
    %v393 = vshll.u32 2102212464, %v381
    %v394 = vshrl.u32 920167782, %v382
    %v395 = vor.u32 %v393, %v394
    %v396 = vshll.u32 920167782, %v381
    %v397 = vshrl.u32 1326507024, %v382
    %v398 = vor.u32 %v396, %v397
    %vm399 = vcmp.lt.s32.totalorder %v380, 1
    %vm400 = vcmp.lt.s32.totalorder %v380, 2
    %vm401 = vcmp.lt.s32.totalorder %v380, 3
    %vm402 = vcmp.lt.s32.totalorder %v380, 4
    %v403 = vsel %vm399, %v383, %v386
    %v404 = vsel %vm402, %v392, 2102212464
    %v405 = vsel %vm401, %v389, %v404
    %v406 = vsel %vm400, %v403, %v405
    %v407 = vsel %vm399, %v386, %v389
    %v408 = vsel %vm402, %v395, 920167782
    %v409 = vsel %vm401, %v392, %v408
    %v410 = vsel %vm400, %v407, %v409
    %v411 = vsel %vm399, %v389, %v392
    %v412 = vsel %vm402, %v398, 1326507024
    %v413 = vsel %vm401, %v395, %v412
    %v414 = vsel %vm400, %v411, %v413
    %v415 = vshll.u32 %v375, 8
    %v416 = vmul.u32.u64.compose %v415, %v414
    %v417 = vextract.low.u32 %v416
    %v418 = vextract.high.u32 %v416
    %v419 = vmul.u32.u64.compose %v415, %v410
    %v420 = vextract.low.u32 %v419
    %v421 = vextract.high.u32 %v419
    %v422 = vmul.u32 %v415, %v406
    %v423 = vadd.s32 %v418, %v420
    %vm424 = vc.u32 %v418, %v420
    %v425 = vadd.s32 %v421, 1
    %v426 = vsel %vm424, %v425, %v421
    %v427 = vadd.s32 %v422, %v426
    %v428 = vadd.s32 %v427, 536870912
    %v429 = vshrl.u32 %v428, 30
    %v430 = vshll.u32 %v429, 30
    %v431 = vsub.s32 %v427, %v430
    %vm432 = vcmp.lt.s32.totalorder %v431, 0
    %v433 = vsub.s32 0, %v431
    %v434 = vsel %vm432, %v433, %v431
    %v435 = vclz %v434
    %v436 = vsub.s32 %v435, 2
    %vm437 = vcmp.gt.s32.totalorder 0, %v436
    %v438 = vsel %vm437, 0, %v436
    %v439 = vsub.s32 32, %v438
    %v440 = vshll.u32 %v431, %v438
    %v441 = vshrl.u32 %v423, %v439
    %v442 = vor.u32 %v440, %v441
    %v443 = vsub.s32 4294967266, %v438
    %v444 = vadd.s32 %v443, 127
    %v445 = vshll.u32 %v444, 23
    %v446 = vor.u32 4788187, %v445
    %v447 = vand.u32 2147483647, %v446
    %v449 = vcvt.s32.f32 %v442
    %v450 = vmul.f32 %v449, %v447
    %v451 = vxor.u32 %v450, 2147483648
    %v452 = vsel %vm369, %v451, %v450
    %v453 = vsub.s32 4, %v429
    %v454 = vsel %vm369, %v453, %v429
    %v455 = vsel %vm368, %v366, %v452
    %v456 = vsel %vm368, 0, %v454
    %v457 = vcosq.f32.pop %v455
    %v458 = vsinq.f32.pop %v455
    %vm459 = vweird.f32 %v366
    %v460 = vadd.s32 %v456, 3
    %v461 = vand.u32 %v460, 3
    %vm462 = vcmp.lt.s32.totalorder %v461, 2
    %vm463 = vcmp.eq.s32.totalorder %v461, 0
    %v464 = vxor.u32 %v458, 2147483648
    %v465 = vsel %vm463, %v457, %v464
    %vm466 = vcmp.eq.s32.totalorder %v461, 2
    %v467 = vxor.u32 %v457, 2147483648
    %v468 = vsel %vm466, %v467, %v458
    %v469 = vsel %vm462, %v465, %v468
    %v470 = vsel %vm459, nan, %v469
    %472 = vrot.lane.b32.xlu0 %v250, 32
    %v473 = vpop.permute.xlu0 %472
    %476 = vrot.lane.b32.xlu0 %v360, 64
    %v477 = vpop.permute.xlu0 %476
    %480 = vrot.lane.b32.xlu0 %v470, 96
    %v481 = vpop.permute.xlu0 %480
    %vm483 = vcmask 261120
    %v484 = vsel %vm483, %v140, %v473
    %vm485 = vcmask 523264
    %v486 = vsel %vm485, %v484, %v477
    %vm487 = vcmask 785408
    %v488 = vsel %vm487, %v486, %v481
    %489 = vst [vmem:[#allocation2] sm:$0xff] %v488
    // Predicated region
    $region14: #{tpu_custom_call.1} parent=1 // pred_check
      _
    $region15: #{tpu_custom_call.1} parent=1 // pred_check_branch
      %491 = sbr.rel (0) target = $region17
    $region16: #{tpu_custom_call.1} parent=1 // pred_region
      %s493 = ssub.s32 128, 128
      %494 = vsyncadd [#allocation3], %s493
      %s496 = sshll.u32 [#allocation2], 4
      %s497 = int_to_ptr.vmem [resolvable:$true] %s496
      %499 = dma.vmem_to_hbm [thread:$0]  %s497, 128, %s3, [#allocation3]
    $region17: #{tpu_custom_call.1} parent=1 // pred_fallthru
      _
    // Predicated region
    $region18: #{tpu_custom_call.1} parent=1 // pred_check
      _
    $region19: #{tpu_custom_call.1} parent=1 // pred_check_branch
      %501 = sbr.rel (0) target = $region21
    $region20: #{tpu_custom_call.1} parent=1 // pred_region
      %502 = dma.done [#allocation3], 128
    $region21: #{tpu_custom_call.1} parent=1 // pred_fallthru
      _
    %503 = vsyncpa [#allocation3], 1

</llo_original>
